<compile_context>
chip_gen: v5e
topology: v5e:2x2
jax: 0.10.0
libtpu: 0.0.40
codegen_flags: <defaults>
</compile_context>

<pallas_src>
import functools
import math

import jax
import jax.numpy as jnp
from jax.experimental import pallas as pl
from jax.experimental.pallas import tpu as pltpu

DTYPE = jnp.float32

# Small-but-lane-dense demo sizes (the real MUSK pooler uses D = Dout = 1024).
BATCH = 2
SEQ_LEN = 8
IN_FEATURES = 128      # multiple of 128 -> lane-dense loads/stores
OUT_FEATURES = 128
LN_EPS = 1e-5


# ------------------------------ Pallas kernel --------------------------------
def _pooler_kernel(x_ref, w_ref, b_ref, o_ref, *, eps):
    # x_ref: (tb, D) CLS rows.  gamma/beta are already folded into w_ref/b_ref.
    x = x_ref[...].astype(jnp.float32)
    mu = jnp.mean(x, axis=-1, keepdims=True)
    xc = x - mu
    var = jnp.mean(xc * xc, axis=-1, keepdims=True)
    h = xc * jax.lax.rsqrt(var + eps)                        # EUP rsqrt

    if w_ref.dtype == jnp.bfloat16:                          # weight shipped as bf16
        h = h.astype(jnp.bfloat16)                           # pack LHS 16-deep too
    acc = jnp.dot(h, w_ref[...], preferred_element_type=jnp.float32)   # MXU, f32 acc
    acc = acc + b_ref[...].astype(jnp.float32)
    o_ref[...] = jnp.tanh(acc).astype(o_ref.dtype)           # EUP tanh


# ------------------------------ tiling helpers --------------------------------
def _vmem_caps():
    """(per-step working-set budget, scoped-vmem limit to request) in bytes."""
    try:
        phys = pltpu.get_tpu_info().vmem_capacity_bytes      # 64 MiB v7x, 128 MiB v5e/v6e
    except Exception:                                        # pragma: no cover
        phys = 64 << 20
    budget = min(phys // 3, 32 << 20)
    limit = min(phys - (8 << 20), 2 * budget + (8 << 20))
    return budget, limit


def _vmem_cost(tb, D, Dout, x_bytes, w_bytes, out_bytes):
    # double-buffered input/output tiles + resident (but possibly double-buffered)
    # weight + f32 intermediates headroom.
    return (2 * tb * D * x_bytes
            + 2 * tb * Dout * out_bytes
            + 2 * D * Dout * w_bytes
            + 2 * Dout * 4
            + tb * (D + Dout) * 4)


def _pick_row_tile(B, D, Dout, x_bytes, w_bytes, out_bytes, budget):
    """Largest row tile that fits the VMEM budget; whole batch if it fits."""
    if B < 8 or _vmem_cost(B, D, Dout, x_bytes, w_bytes, out_bytes) <= budget:
        return B
    tb = min(2048, (B // 8) * 8)
    while tb > 8 and _vmem_cost(tb, D, Dout, x_bytes, w_bytes, out_bytes) > budget:
        tb = max(8, ((tb // 2) // 8) * 8)
    return tb


# ------------------------------ wrapper ---------------------------------------
def pooler_forward(x, params, *, eps=LN_EPS, bf16_matmul=False):
    """x: (B, T, D) token sequence -> (B, Dout) pooled output (Pooler.forward)."""
    B, T, D = x.shape
    w = params["dense_w"]                                    # (D, Dout) == torch Linear.weight.T
    Dout = w.shape[1]

    # Fold LayerNorm affine into the dense layer (free win, done once per call):
    #   LN(x)@W + b = ((x-mu)*rsqrt(var+eps)) @ (diag(g)@W) + (beta@W + b)
    g = params["ln_g"].astype(jnp.float32)
    beta = params["ln_b"].astype(jnp.float32)
    w_f32 = w.astype(jnp.float32)
    w_fold = g[:, None] * w_f32
    b_fold = (beta @ w_f32 + params["dense_b"].astype(jnp.float32)).reshape(1, Dout)
    # Pre-cast the weight in the wrapper (NOT inside the kernel) so HBM weight
    # traffic is halved and no per-step VPU converts are emitted.
    w_fold = w_fold.astype(jnp.bfloat16) if bf16_matmul else w_fold.astype(w.dtype)

    # CLS gather: when D is lane-aligned AND each row's contiguous DMA chunk is
    # >= 512 B, feed the CLS token straight out of the full sequence via a free
    # reshape (B, T, D) -> (B, T*D) and let the BlockSpec pull columns [0, D).
    # Otherwise fall back to a tiny host-side slice (tiny strided DMA chunks
    # under-utilize HBM bandwidth).
    x_bytes = x.dtype.itemsize
    if D % 128 == 0 and D * x_bytes >= 512:
        cls_src = x.reshape(B, T * D)
    else:
        cls_src = x[:, 0, :]

    w_bytes = w_fold.dtype.itemsize
    out_bytes = x.dtype.itemsize
    budget, vmem_limit = _vmem_caps()
    tb = _pick_row_tile(B, D, Dout, x_bytes, w_bytes, out_bytes, budget)
    n_blocks = pl.cdiv(B, tb)

    # Only shard row blocks across TensorCores (v7x) when each core gets enough
    # rows to amortize duplicating the weight DMA.
    semantics = ("parallel",) if (n_blocks >= 2 and tb >= 256) else ("arbitrary",)
    cp_kwargs = dict(dimension_semantics=semantics)
    if _vmem_cost(tb, D, Dout, x_bytes, w_bytes, out_bytes) > (14 << 20):
        cp_kwargs["vmem_limit_bytes"] = int(vmem_limit)

    cost = pl.CostEstimate(
        flops=2 * B * D * Dout,
        transcendentals=B * Dout + B,                        # tanh + per-row rsqrt
        bytes_accessed=(B * D * x_bytes + D * Dout * w_bytes
                        + Dout * 4 + B * Dout * out_bytes),
    )

    kernel = functools.partial(_pooler_kernel, eps=eps)
    return pl.pallas_call(
        kernel,
        out_shape=jax.ShapeDtypeStruct((B, Dout), x.dtype),
        grid=(n_blocks,),
        in_specs=[
            pl.BlockSpec((tb, D), lambda i: (i, 0)),         # CLS rows only
            pl.BlockSpec((D, Dout), lambda i: (0, 0)),       # folded weight (resident)
            pl.BlockSpec((1, Dout), lambda i: (0, 0)),       # folded bias
        ],
        out_specs=pl.BlockSpec((tb, Dout), lambda i: (i, 0)),
        compiler_params=pltpu.CompilerParams(**cp_kwargs),
        cost_estimate=cost,
    )(cls_src, w_fold, b_fold)


# ------------------------------ parameters & reference ------------------------
def init_params(seed=0, d_in=IN_FEATURES, d_out=OUT_FEATURES):
    k_w, k_b, k_g, k_beta = jax.random.split(jax.random.PRNGKey(seed), 4)
    bound = 1.0 / math.sqrt(d_in)            # torch nn.Linear default init range
    return dict(
        ln_g=1.0 + 0.05 * jax.random.normal(k_g, (d_in,), DTYPE),
        ln_b=0.05 * jax.random.normal(k_beta, (d_in,), DTYPE),
        dense_w=jax.random.uniform(k_w, (d_in, d_out), DTYPE, -bound, bound),
        dense_b=jax.random.uniform(k_b, (d_out,), DTYPE, -bound, bound),
    )


def pooler_reference(x, params, *, eps=LN_EPS):
    """Pure-JAX reference (mirrors the PyTorch Pooler exactly)."""
    cls = x[:, 0, :].astype(jnp.float32)
    mu = jnp.mean(cls, axis=-1, keepdims=True)
    var = jnp.mean((cls - mu) ** 2, axis=-1, keepdims=True)
    h = (cls - mu) * jax.lax.rsqrt(var + eps) * params["ln_g"] + params["ln_b"]
    return jnp.tanh(h @ params["dense_w"] + params["dense_b"]).astype(x.dtype)


# ---------------------------------- main --------------------------------------
if __name__ == "__main__":
    params = init_params(seed=0)
    x = jax.random.normal(jax.random.PRNGKey(0), (BATCH, SEQ_LEN, IN_FEATURES), DTYPE)

    fwd = jax.jit(functools.partial(pooler_forward, eps=LN_EPS, bf16_matmul=False))
    out = fwd(x, params)
    jax.block_until_ready(out)

    assert out.shape == (BATCH, OUT_FEATURES), out.shape

    ref = pooler_reference(x, params)
    max_err = float(jnp.max(jnp.abs(out - ref)))
    assert jnp.allclose(out, ref, rtol=1e-3, atol=1e-3), f"max abs err {max_err}"

    print("KERNEL_OK")
</pallas_src>

<mosaic_0001>
module attributes {stable_mosaic.version = 11 : i64} {
  func.func @_pooler_kernel(%arg0: i32, %arg1: memref<2x128xf32, #tpu.memory_space<vmem>>, %arg2: memref<128x128xf32, #tpu.memory_space<vmem>>, %arg3: memref<1x128xf32, #tpu.memory_space<vmem>>, %arg4: memref<2x128xf32, #tpu.memory_space<vmem>>) attributes {dimension_semantics = [#tpu.dimension_semantics<arbitrary>], iteration_bounds = array<i64: 1>, scalar_prefetch = 0 : i64, scratch_operands = 0 : i64, tpu.core_type = #tpu.core_type<tc>, window_params = [{transform_indices = @transform_0, window_bounds = array<i64: 2, 128>}, {pipeline_mode = #tpu.pipeline_mode<synchronous>, transform_indices = @transform_1, window_bounds = array<i64: 128, 128>}, {pipeline_mode = #tpu.pipeline_mode<synchronous>, transform_indices = @transform_2, window_bounds = array<i64: 1, 128>}, {transform_indices = @transform_3, window_bounds = array<i64: 2, 128>}]} {
    %c0 = arith.constant 0 : index
    %c0_0 = arith.constant 0 : index
    %0 = vector.load %arg1[%c0, %c0_0] : memref<2x128xf32, #tpu.memory_space<vmem>>, vector<2x128xf32>
    %cst = arith.constant dense<0.000000e+00> : vector<2xf32>
    %1 = vector.multi_reduction <add>, %0, %cst [1] : vector<2x128xf32> to vector<2xf32>
    %2 = vector.shape_cast %1 : vector<2xf32> to vector<2x1xf32>
    %cst_1 = arith.constant 1.280000e+02 : f32
    %3 = vector.broadcast %cst_1 : f32 to vector<2x1xf32>
    %4 = arith.divf %2, %3 : vector<2x1xf32>
    %5 = vector.broadcast %4 : vector<2x1xf32> to vector<2x128xf32>
    %6 = arith.subf %0, %5 : vector<2x128xf32>
    %7 = arith.mulf %6, %6 : vector<2x128xf32>
    %cst_2 = arith.constant dense<0.000000e+00> : vector<2xf32>
    %8 = vector.multi_reduction <add>, %7, %cst_2 [1] : vector<2x128xf32> to vector<2xf32>
    %9 = vector.shape_cast %8 : vector<2xf32> to vector<2x1xf32>
    %cst_3 = arith.constant 1.280000e+02 : f32
    %10 = vector.broadcast %cst_3 : f32 to vector<2x1xf32>
    %11 = arith.divf %9, %10 : vector<2x1xf32>
    %cst_4 = arith.constant 9.99999974E-6 : f32
    %12 = vector.broadcast %cst_4 : f32 to vector<2x1xf32>
    %13 = arith.addf %11, %12 : vector<2x1xf32>
    %14 = math.rsqrt %13 : vector<2x1xf32>
    %15 = vector.broadcast %14 : vector<2x1xf32> to vector<2x128xf32>
    %16 = arith.mulf %6, %15 : vector<2x128xf32>
    %c0_5 = arith.constant 0 : index
    %c0_6 = arith.constant 0 : index
    %17 = vector.load %arg2[%c0_5, %c0_6] : memref<128x128xf32, #tpu.memory_space<vmem>>, vector<128x128xf32>
    %cst_7 = arith.constant dense<0.000000e+00> : vector<2x128xf32>
    %18 = tpu.matmul %16, %17, %cst_7 {dimension_numbers = #tpu.dot_dimension_numbers<[1], [0], [0], [1], [0, 0, 1, 1], [], []>} : vector<2x128xf32>, vector<128x128xf32>, vector<2x128xf32> -> vector<2x128xf32>
    %c0_8 = arith.constant 0 : index
    %c0_9 = arith.constant 0 : index
    %19 = vector.load %arg3[%c0_8, %c0_9] : memref<1x128xf32, #tpu.memory_space<vmem>>, vector<1x128xf32>
    %20 = vector.broadcast %19 : vector<1x128xf32> to vector<2x128xf32>
    %21 = arith.addf %18, %20 : vector<2x128xf32>
    %22 = math.tanh %21 : vector<2x128xf32>
    %c0_10 = arith.constant 0 : index
    %c0_11 = arith.constant 0 : index
    %23 = vector.load %arg4[%c0_10, %c0_11] : memref<2x128xf32, #tpu.memory_space<vmem>>, vector<2x128xf32>
    tpu.vector_store %arg4[%c0_10, %c0_11], %22 {strides = array<i32>} : memref<2x128xf32, #tpu.memory_space<vmem>>, vector<2x128xf32>,
    return
  }
  func.func @transform_0(%arg0: i32) -> (i32, i32) {
    %c0_i32 = arith.constant 0 : i32
    %c0_i32_0 = arith.constant 0 : i32
    return %arg0, %c0_i32 : i32, i32
  }
  func.func @transform_1(%arg0: i32) -> (i32, i32) {
    %c0_i32 = arith.constant 0 : i32
    %c0_i32_0 = arith.constant 0 : i32
    %c0_i32_1 = arith.constant 0 : i32
    return %c0_i32, %c0_i32_0 : i32, i32
  }
  func.func @transform_2(%arg0: i32) -> (i32, i32) {
    %c0_i32 = arith.constant 0 : i32
    %c0_i32_0 = arith.constant 0 : i32
    %c0_i32_1 = arith.constant 0 : i32
    return %c0_i32, %c0_i32_0 : i32, i32
  }
  func.func @transform_3(%arg0: i32) -> (i32, i32) {
    %c0_i32 = arith.constant 0 : i32
    %c0_i32_0 = arith.constant 0 : i32
    return %arg0, %c0_i32 : i32, i32
  }
}

</mosaic_0001>

<llo_original>
// kernel: pooler_forward.1
$region0: #{pooler_forward.1}
  #allocation0 [shape = 'u32[]', space=smem, size = 0x4, offset = 0x4, fixed_abs, tag = 'smem constant byte address 0x4 - core index']
  #allocation1 [shape = 'u32[72,128]{1,0:T(1,128)}', space=vmem, size = 0x9000, scoped, tag = 'internal scratch']
  %s0 = inlined_call_operand.vmem [shape: f32[2,1024], index: 0, kind: input, shape index: {}]
  %s1 = inlined_call_operand.vmem [shape: f32[128,128], index: 1, kind: input, shape index: {}]
  %s2 = inlined_call_operand.vmem [shape: f32[1,128], index: 2, kind: input, shape index: {}]
  %s3 = inlined_call_operand.hbm [shape: f32[2,128], index: 3, kind: output, shape index: {}]
  %s4 = sld [smem:[#allocation0]]
  $region22: #{pooler_forward.1} parent=0
    _
  %s6 = ssub.s32 1, %s4
  %s7 = scalar_select 0, %s6, %s4
  $region1: #{pooler_forward.1} parent=0
    #allocation2 [shape = 'u8[1024]{0}', space=vmem, size = 0x400, scoped, tag = 'output window, operand 0, single buffered']
    #allocation3 [shape = 's32[1]{0}', space=sflag, size = 0x4, scoped, tag = 'scoped memory for pooler_forward.1']
    %8 = vsyncpa [#allocation3], 0
    // Predicated region
    $region2: #{pooler_forward.1} parent=1 // pred_check
      _
    $region3: #{pooler_forward.1} parent=1 // pred_check_branch
      %10 = sbr.rel (0) target = $region5
    $region4: #{pooler_forward.1} parent=1 // pred_region
      _
    $region5: #{pooler_forward.1} parent=1 // pred_fallthru
      _
    // Predicated region
    $region6: #{pooler_forward.1} parent=1 // pred_check
      _
    $region7: #{pooler_forward.1} parent=1 // pred_check_branch
      %12 = sbr.rel (0) target = $region9
    $region8: #{pooler_forward.1} parent=1 // pred_region
      _
    $region9: #{pooler_forward.1} parent=1 // pred_fallthru
      _
    // Predicated region
    $region10: #{pooler_forward.1} parent=1 // pred_check
      _
    $region11: #{pooler_forward.1} parent=1 // pred_check_branch
      %14 = sbr.rel (0) target = $region13
    $region12: #{pooler_forward.1} parent=1 // pred_region
      _
    $region13: #{pooler_forward.1} parent=1 // pred_fallthru
      _
    %v15 = vld [vmem:[%s0] sm:$0x3]
    %vm16 = vcmask 1041408
    %v17 = vsel %vm16, %v15, 0.0
    %18 = vadd.xlane.f32.xlu0 %v17
    %v19 = vpop.xlane.xlu0 %18
    %v20 = vrcp.pop 128.0
    %v21 = vmul.f32 128.0, %v20
    %v22 = vsub.f32 1.0, %v21
    %v23 = vmul.f32 %v20, %v22
    %v24 = vadd.f32 %v20, %v23
    %vm25 = vweird.f32 %v20
    %v26 = vsel %vm25, %v20, %v24
    %v27 = vmul.f32 %v19, %v26
    %v28 = vsub.f32 %v15, %v27
    %v29 = vmul.f32 %v28, %v28
    %v30 = vsel %vm16, %v29, 0.0
    %31 = vadd.xlane.f32.xlu0 %v30
    %v32 = vpop.xlane.xlu0 %31
    %v33 = vmul.f32 %v32, %v26
    %v34 = vadd.f32 %v33, 1e-05
    %v35 = vrsqrt.pop %v34
    %v36 = vmul.f32 %v35, %v34
    %v37 = vmul.f32 %v36, %v35
    %v38 = vmul.f32 0.5, %v37
    %v39 = vsub.f32 1.5, %v38
    %v40 = vmul.f32 %v35, %v39
    %vm41 = vweird.f32 %v34
    %vm42 = vweird.f32 %v35
    %vm43 = vmor %vm41, %vm42
    %v44 = vsel %vm43, %v35, %v40
    %v45 = vmul.f32 %v28, %v44
    %v46 = vld [vmem:[%s1] sm:$0xff]
    %v47 = vld [vmem:[%s1 + $0x8] sm:$0xff]
    %v48 = vld [vmem:[%s1 + $0x10] sm:$0xff]
    %v49 = vld [vmem:[%s1 + $0x18] sm:$0xff]
    %v50 = vld [vmem:[%s1 + $0x20] sm:$0xff]
    %v51 = vld [vmem:[%s1 + $0x28] sm:$0xff]
    %v52 = vld [vmem:[%s1 + $0x30] sm:$0xff]
    %v53 = vld [vmem:[%s1 + $0x38] sm:$0xff]
    %v54 = vld [vmem:[%s1 + $0x40] sm:$0xff]
    %v55 = vld [vmem:[%s1 + $0x48] sm:$0xff]
    %v56 = vld [vmem:[%s1 + $0x50] sm:$0xff]
    %v57 = vld [vmem:[%s1 + $0x58] sm:$0xff]
    %v58 = vld [vmem:[%s1 + $0x60] sm:$0xff]
    %v59 = vld [vmem:[%s1 + $0x68] sm:$0xff]
    %v60 = vld [vmem:[%s1 + $0x70] sm:$0xff]
    %v61 = vld [vmem:[%s1 + $0x78] sm:$0xff]
    %v62 = vld [vmem:[%s2] sm:$0x1]
    %v64 = vperm.slane %v62, 0
    %66 = vmatpush.msra.mxu0 %v61
    %67 = vmatpush.msra.mxu0 %v60
    %68 = vmatpush.msra.mxu0 %v59
    %69 = vmatpush.msra.mxu0 %v58
    %70 = vmatpush.msra.mxu0 %v57
    %71 = vmatpush.msra.mxu0 %v56
    %72 = vmatpush.msra.mxu0 %v55
    %73 = vmatpush.msra.mxu0 %v54
    %74 = vmatpush.msra.mxu0 %v53
    %75 = vmatpush.msra.mxu0 %v52
    %76 = vmatpush.msra.mxu0 %v51
    %77 = vmatpush.msra.mxu0 %v50
    %78 = vmatpush.msra.mxu0 %v49
    %79 = vmatpush.msra.mxu0 %v48
    %80 = vmatpush.msra.mxu0 %v47
    %81 = vmatpush.msra.mxu0 %v46
    %82 = vmatmul.f32.gmra.mxu0 %v45
    %v83 = vpop.f32.mrf.mxu0
    %v84 = vadd.f32 %v64, %v83
    %85 = vdwg.mxu0
    %v86 = vtanh.pop %v84
    %87 = vst [vmem:[#allocation2] sm:$0x3] %v86
    // Predicated region
    $region14: #{pooler_forward.1} parent=1 // pred_check
      _
    $region15: #{pooler_forward.1} parent=1 // pred_check_branch
      %89 = sbr.rel (0) target = $region17
    $region16: #{pooler_forward.1} parent=1 // pred_region
      %91 = vsyncadd [#allocation3], 0
      %s93 = sshll.u32 [#allocation2], 4
      %s94 = int_to_ptr.vmem [resolvable:$true] %s93
      %s95 = sshll.u32 %s3, 4
      %s96 = int_to_ptr.hbm [resolvable:$true] %s95
      %98 = dma.vmem_to_hbm [thread:$0]  %s94, 32, %s96, [#allocation3]
    $region17: #{pooler_forward.1} parent=1 // pred_fallthru
      _
    // Predicated region
    $region18: #{pooler_forward.1} parent=1 // pred_check
      _
    $region19: #{pooler_forward.1} parent=1 // pred_check_branch
      %100 = sbr.rel (0) target = $region21
    $region20: #{pooler_forward.1} parent=1 // pred_region
      %102 = dma.done [#allocation3], 32
    $region21: #{pooler_forward.1} parent=1 // pred_fallthru
      _
    %103 = vsyncpa [#allocation3], 1

</llo_original>
